<compile_context>
chip_gen: v7x
topology: tpu7x:2x2x1
jax: 0.10.0
libtpu: 0.0.40
codegen_flags: <defaults>
</compile_context>

<pallas_src>
import functools

import jax
import jax.numpy as jnp
from jax.experimental import pallas as pl
from jax.experimental.pallas import tpu as pltpu


def residual_block_kernel(x_ref, w1_ref, b1_ref, dw_ref, b2_ref,
                          w3_ref, b3_ref, m_ref, out_ref, *, W):
    """One grid step: Nb images in (Nb, C, H*W) layout (H*W on lanes)."""
    Nb, Cin, HW = x_ref.shape
    Cmid = w1_ref.shape[0]

    x = x_ref[...].astype(jnp.float32)       # (Nb, Cin, HW)
    w1 = w1_ref[...]                         # (Cmid, Cin)   BN scale folded in
    b1 = b1_ref[...]                         # (Cmid, 1)
    dw = dw_ref[...]                         # (Cmid, 9)     BN scale folded in
    b2 = b2_ref[...]                         # (Cmid, 1)
    w3 = w3_ref[...]                         # (Cout, Cmid)  BN scale folded in
    b3 = b3_ref[...]                         # (Cout, 1)
    masks = m_ref[...]                       # (9, HW) 1.0 where tap in-bounds

    # ---- conv1: 1x1 pointwise (+BN+ReLU).  K=Cin is tiny -> VPU FMA loop.
    y1 = b1[None, :, :]
    for c in range(Cin):
        y1 = y1 + w1[:, c:c + 1][None, :, :] * x[:, c:c + 1, :]
    y1 = jnp.maximum(y1, 0.0)                # (Nb, Cmid, HW)

    # ---- conv2: 3x3 depthwise, stride 1, padding 1 (+BN+ReLU).
    # Spatial shifts done as lane rotations on the value; out-of-bounds
    # neighbours are zeroed by the precomputed per-tap masks.
    acc = b2[None, :, :]
    for di in (-1, 0, 1):
        for dj in (-1, 0, 1):
            t = (di + 1) * 3 + (dj + 1)      # weight index (di+1, dj+1)
            off = di * W + dj                # flat spatial offset
            if off == 0:
                win = y1
            else:
                win = pltpu.roll(y1, shift=(-off) % HW, axis=2)
                win = win * masks[t:t + 1, :][None, :, :]
            acc = acc + dw[:, t:t + 1][None, :, :] * win
    y2 = jnp.maximum(acc, 0.0)               # (Nb, Cmid, HW)

    # ---- conv3: 1x1 pointwise (+BN), then residual add.
    y3 = b3[None, :, :]
    for m in range(Cmid):
        y3 = y3 + w3[:, m:m + 1][None, :, :] * y2[:, m:m + 1, :]
    out_ref[...] = (y3 + x).astype(out_ref.dtype)


def fold_bn(conv_bias, gamma, beta, mean, var, eps=1e-5):
    """Fold conv bias + BatchNorm (eval mode) into per-channel scale & bias."""
    scale = gamma / jnp.sqrt(var + eps)
    bias = (conv_bias - mean) * scale + beta
    return scale, bias


def _pick_batch_tile(N, Cin, Cmid, Cout, HW, budget_bytes=8 << 20):
    """Largest divisor of N whose per-step activations fit a VMEM budget."""
    per_img = (Cin + 4 * Cmid + 2 * Cout) * HW * 4 * 2
    nb = int(max(1, min(N, budget_bytes // max(per_img, 1))))
    while N % nb:
        nb -= 1
    return nb


def residual_block(x_nchw, params):
    """x_nchw: (N, Cin, H, W) float32. Returns (N, Cout, H, W)."""
    (w1, s1, b1, dw, s2, b2, w3, s3, b3) = params
    N, Cin, H, W = x_nchw.shape
    Cmid = w1.shape[1]
    Cout = w3.shape[1]
    assert Cout == Cin, "residual add requires out_channels == in_channels"
    HW = H * W

    # NCHW with flattened (lane-dense) spatial axis — only a reshape, no transpose.
    x_flat = x_nchw.reshape(N, Cin, HW)

    # Fold BN scale into the conv weights; keep per-channel biases separate.
    w1t = (w1 * s1[None, :]).T.astype(jnp.float32)                    # (Cmid, Cin)
    dwt = (dw * s2[None, None, :]).reshape(9, Cmid).T.astype(jnp.float32)  # (Cmid, 9)
    w3t = (w3 * s3[None, :]).T.astype(jnp.float32)                    # (Cout, Cmid)
    b1c = b1.reshape(Cmid, 1).astype(jnp.float32)
    b2c = b2.reshape(Cmid, 1).astype(jnp.float32)
    b3c = b3.reshape(Cout, 1).astype(jnp.float32)

    # Per-tap validity masks for the 3x3 depthwise conv on the flat spatial axis.
    s = jnp.arange(HW, dtype=jnp.int32)
    hh, ww = s // W, s % W
    rows = []
    for di in (-1, 0, 1):
        for dj in (-1, 0, 1):
            valid = ((hh + di >= 0) & (hh + di < H) &
                     (ww + dj >= 0) & (ww + dj < W))
            rows.append(valid.astype(jnp.float32))
    masks = jnp.stack(rows, axis=0)                                   # (9, HW)

    Nb = _pick_batch_tile(N, Cin, Cmid, Cout, HW)

    out_flat = pl.pallas_call(
        functools.partial(residual_block_kernel, W=W),
        out_shape=jax.ShapeDtypeStruct((N, Cout, HW), x_nchw.dtype),
        grid_spec=pltpu.PrefetchScalarGridSpec(
            num_scalar_prefetch=0,
            grid=(N // Nb,),
            in_specs=[
                pl.BlockSpec((Nb, Cin, HW), lambda n: (n, 0, 0)),   # x
                pl.BlockSpec((Cmid, Cin),   lambda n: (0, 0)),      # w1 (folded)
                pl.BlockSpec((Cmid, 1),     lambda n: (0, 0)),      # b1
                pl.BlockSpec((Cmid, 9),     lambda n: (0, 0)),      # dw (folded)
                pl.BlockSpec((Cmid, 1),     lambda n: (0, 0)),      # b2
                pl.BlockSpec((Cout, Cmid),  lambda n: (0, 0)),      # w3 (folded)
                pl.BlockSpec((Cout, 1),     lambda n: (0, 0)),      # b3
                pl.BlockSpec((9, HW),       lambda n: (0, 0)),      # tap masks
            ],
            out_specs=pl.BlockSpec((Nb, Cout, HW), lambda n: (n, 0, 0)),
        ),
        compiler_params=pltpu.CompilerParams(
            dimension_semantics=("parallel",)),
    )(x_flat, w1t, b1c, dwt, b2c, w3t, b3c, masks)

    return out_flat.reshape(N, Cout, H, W)


def reference(x_nchw, params):
    """Pure-JAX reference of the same forward pass (NHWC math)."""
    (w1, s1, b1, dw, s2, b2, w3, s3, b3) = params
    x = jnp.transpose(x_nchw, (0, 2, 3, 1)).astype(jnp.float32)  # NHWC
    N, H, W, Cin = x.shape

    y = jnp.maximum(jnp.einsum('nhwc,cm->nhwm', x, w1) * s1 + b1, 0.0)
    yp = jnp.pad(y, ((0, 0), (1, 1), (1, 1), (0, 0)))
    acc = jnp.zeros_like(y)
    for di in range(3):
        for dj in range(3):
            acc = acc + yp[:, di:di + H, dj:dj + W, :] * dw[di, dj]
    y = jnp.maximum(acc * s2 + b2, 0.0)
    y = jnp.einsum('nhwm,mo->nhwo', y, w3) * s3 + b3
    y = y + x
    return jnp.transpose(y, (0, 3, 1, 2))


def make_params(key, in_channels, mid_channels, out_channels):
    ks = jax.random.split(key, 12)
    eps = 1e-5

    # conv1: 1x1, (Cin -> Cmid). Stored as (Cin, Cmid).
    w1 = jax.random.normal(ks[0], (in_channels, mid_channels), jnp.float32) * 0.1
    cb1 = jax.random.normal(ks[1], (mid_channels,), jnp.float32) * 0.05
    g1 = 1.0 + 0.1 * jax.random.normal(ks[2], (mid_channels,), jnp.float32)
    be1 = 0.05 * jax.random.normal(ks[3], (mid_channels,), jnp.float32)
    s1, b1 = fold_bn(cb1, g1, be1, jnp.zeros(mid_channels), jnp.ones(mid_channels), eps)

    # conv2: 3x3 depthwise, groups=mid. Stored as (3, 3, Cmid).
    dw = jax.random.normal(ks[4], (3, 3, mid_channels), jnp.float32) * 0.1
    cb2 = jax.random.normal(ks[5], (mid_channels,), jnp.float32) * 0.05
    g2 = 1.0 + 0.1 * jax.random.normal(ks[6], (mid_channels,), jnp.float32)
    be2 = 0.05 * jax.random.normal(ks[7], (mid_channels,), jnp.float32)
    s2, b2 = fold_bn(cb2, g2, be2, jnp.zeros(mid_channels), jnp.ones(mid_channels), eps)

    # conv3: 1x1, (Cmid -> Cout). Stored as (Cmid, Cout).
    w3 = jax.random.normal(ks[8], (mid_channels, out_channels), jnp.float32) * 0.1
    cb3 = jax.random.normal(ks[9], (out_channels,), jnp.float32) * 0.05
    g3 = 1.0 + 0.1 * jax.random.normal(ks[10], (out_channels,), jnp.float32)
    be3 = 0.05 * jax.random.normal(ks[11], (out_channels,), jnp.float32)
    s3, b3 = fold_bn(cb3, g3, be3, jnp.zeros(out_channels), jnp.ones(out_channels), eps)

    return (w1, s1, b1, dw, s2, b2, w3, s3, b3)


if __name__ == "__main__":
    key = jax.random.PRNGKey(0)
    k_x, k_p = jax.random.split(key)

    # ResidualBlock(in_channels=4, mid_channels=8, out_channels=4, dwise_stride=1)
    N, Cin, Cmid, Cout, H, W = 2, 4, 8, 4, 16, 16

    x = jax.random.normal(k_x, (N, Cin, H, W), jnp.float32)   # NCHW input
    params = make_params(k_p, Cin, Cmid, Cout)

    out = residual_block(x, params)
    out = jax.block_until_ready(out)

    ref = reference(x, params)
    assert out.shape == (N, Cout, H, W)
    assert jnp.allclose(out, ref, atol=1e-4, rtol=1e-4), "mismatch vs reference"

    print("KERNEL_OK")
</pallas_src>

<mosaic_0001>
module attributes {stable_mosaic.version = 11 : i64} {
  func.func @residual_block_kernel(%arg0: i32, %arg1: memref<2x4x256xf32, #tpu.memory_space<vmem>>, %arg2: memref<8x4xf32, #tpu.memory_space<vmem>>, %arg3: memref<8x1xf32, #tpu.memory_space<vmem>>, %arg4: memref<8x9xf32, #tpu.memory_space<vmem>>, %arg5: memref<8x1xf32, #tpu.memory_space<vmem>>, %arg6: memref<4x8xf32, #tpu.memory_space<vmem>>, %arg7: memref<4x1xf32, #tpu.memory_space<vmem>>, %arg8: memref<9x256xf32, #tpu.memory_space<vmem>>, %arg9: memref<2x4x256xf32, #tpu.memory_space<vmem>>) attributes {dimension_semantics = [#tpu.dimension_semantics<parallel>], iteration_bounds = array<i64: 1>, scalar_prefetch = 0 : i64, scratch_operands = 0 : i64, tpu.core_type = #tpu.core_type<tc>, window_params = [{transform_indices = @transform_0, window_bounds = array<i64: 2, 4, 256>}, {pipeline_mode = #tpu.pipeline_mode<synchronous>, transform_indices = @transform_1, window_bounds = array<i64: 8, 4>}, {pipeline_mode = #tpu.pipeline_mode<synchronous>, transform_indices = @transform_2, window_bounds = array<i64: 8, 1>}, {pipeline_mode = #tpu.pipeline_mode<synchronous>, transform_indices = @transform_3, window_bounds = array<i64: 8, 9>}, {pipeline_mode = #tpu.pipeline_mode<synchronous>, transform_indices = @transform_4, window_bounds = array<i64: 8, 1>}, {pipeline_mode = #tpu.pipeline_mode<synchronous>, transform_indices = @transform_5, window_bounds = array<i64: 4, 8>}, {pipeline_mode = #tpu.pipeline_mode<synchronous>, transform_indices = @transform_6, window_bounds = array<i64: 4, 1>}, {pipeline_mode = #tpu.pipeline_mode<synchronous>, transform_indices = @transform_7, window_bounds = array<i64: 9, 256>}, {transform_indices = @transform_8, window_bounds = array<i64: 2, 4, 256>}]} {
    %c0 = arith.constant 0 : index
    %c0_0 = arith.constant 0 : index
    %c0_1 = arith.constant 0 : index
    %0 = vector.load %arg1[%c0, %c0_0, %c0_1] : memref<2x4x256xf32, #tpu.memory_space<vmem>>, vector<2x4x256xf32>
    %c0_2 = arith.constant 0 : index
    %c0_3 = arith.constant 0 : index
    %1 = vector.load %arg2[%c0_2, %c0_3] : memref<8x4xf32, #tpu.memory_space<vmem>>, vector<8x4xf32>
    %c0_4 = arith.constant 0 : index
    %c0_5 = arith.constant 0 : index
    %2 = vector.load %arg3[%c0_4, %c0_5] : memref<8x1xf32, #tpu.memory_space<vmem>>, vector<8x1xf32>
    %c0_6 = arith.constant 0 : index
    %c0_7 = arith.constant 0 : index
    %3 = vector.load %arg4[%c0_6, %c0_7] : memref<8x9xf32, #tpu.memory_space<vmem>>, vector<8x9xf32>
    %c0_8 = arith.constant 0 : index
    %c0_9 = arith.constant 0 : index
    %4 = vector.load %arg5[%c0_8, %c0_9] : memref<8x1xf32, #tpu.memory_space<vmem>>, vector<8x1xf32>
    %c0_10 = arith.constant 0 : index
    %c0_11 = arith.constant 0 : index
    %5 = vector.load %arg6[%c0_10, %c0_11] : memref<4x8xf32, #tpu.memory_space<vmem>>, vector<4x8xf32>
    %c0_12 = arith.constant 0 : index
    %c0_13 = arith.constant 0 : index
    %6 = vector.load %arg7[%c0_12, %c0_13] : memref<4x1xf32, #tpu.memory_space<vmem>>, vector<4x1xf32>
    %c0_14 = arith.constant 0 : index
    %c0_15 = arith.constant 0 : index
    %7 = vector.load %arg8[%c0_14, %c0_15] : memref<9x256xf32, #tpu.memory_space<vmem>>, vector<9x256xf32>
    %8 = vector.shape_cast %2 : vector<8x1xf32> to vector<1x8x1xf32>
    %9 = vector.extract_strided_slice %1 {offsets = [0, 0], sizes = [8, 1], strides = [1, 1]} : vector<8x4xf32> to vector<8x1xf32>
    %10 = vector.shape_cast %9 : vector<8x1xf32> to vector<1x8x1xf32>
    %11 = vector.extract_strided_slice %0 {offsets = [0, 0, 0], sizes = [2, 1, 256], strides = [1, 1, 1]} : vector<2x4x256xf32> to vector<2x1x256xf32>
    %12 = vector.broadcast %10 : vector<1x8x1xf32> to vector<2x8x256xf32>
    %13 = vector.broadcast %11 : vector<2x1x256xf32> to vector<2x8x256xf32>
    %14 = arith.mulf %12, %13 : vector<2x8x256xf32>
    %15 = vector.broadcast %8 : vector<1x8x1xf32> to vector<2x8x256xf32>
    %16 = arith.addf %15, %14 : vector<2x8x256xf32>
    %17 = vector.extract_strided_slice %1 {offsets = [0, 1], sizes = [8, 1], strides = [1, 1]} : vector<8x4xf32> to vector<8x1xf32>
    %18 = vector.shape_cast %17 : vector<8x1xf32> to vector<1x8x1xf32>
    %19 = vector.extract_strided_slice %0 {offsets = [0, 1, 0], sizes = [2, 1, 256], strides = [1, 1, 1]} : vector<2x4x256xf32> to vector<2x1x256xf32>
    %20 = vector.broadcast %18 : vector<1x8x1xf32> to vector<2x8x256xf32>
    %21 = vector.broadcast %19 : vector<2x1x256xf32> to vector<2x8x256xf32>
    %22 = arith.mulf %20, %21 : vector<2x8x256xf32>
    %23 = arith.addf %16, %22 : vector<2x8x256xf32>
    %24 = vector.extract_strided_slice %1 {offsets = [0, 2], sizes = [8, 1], strides = [1, 1]} : vector<8x4xf32> to vector<8x1xf32>
    %25 = vector.shape_cast %24 : vector<8x1xf32> to vector<1x8x1xf32>
    %26 = vector.extract_strided_slice %0 {offsets = [0, 2, 0], sizes = [2, 1, 256], strides = [1, 1, 1]} : vector<2x4x256xf32> to vector<2x1x256xf32>
    %27 = vector.broadcast %25 : vector<1x8x1xf32> to vector<2x8x256xf32>
    %28 = vector.broadcast %26 : vector<2x1x256xf32> to vector<2x8x256xf32>
    %29 = arith.mulf %27, %28 : vector<2x8x256xf32>
    %30 = arith.addf %23, %29 : vector<2x8x256xf32>
    %31 = vector.extract_strided_slice %1 {offsets = [0, 3], sizes = [8, 1], strides = [1, 1]} : vector<8x4xf32> to vector<8x1xf32>
    %32 = vector.shape_cast %31 : vector<8x1xf32> to vector<1x8x1xf32>
    %33 = vector.extract_strided_slice %0 {offsets = [0, 3, 0], sizes = [2, 1, 256], strides = [1, 1, 1]} : vector<2x4x256xf32> to vector<2x1x256xf32>
    %34 = vector.broadcast %32 : vector<1x8x1xf32> to vector<2x8x256xf32>
    %35 = vector.broadcast %33 : vector<2x1x256xf32> to vector<2x8x256xf32>
    %36 = arith.mulf %34, %35 : vector<2x8x256xf32>
    %37 = arith.addf %30, %36 : vector<2x8x256xf32>
    %cst = arith.constant 0.000000e+00 : f32
    %38 = vector.broadcast %cst : f32 to vector<2x8x256xf32>
    %39 = arith.maximumf %37, %38 : vector<2x8x256xf32>
    %40 = vector.shape_cast %4 : vector<8x1xf32> to vector<1x8x1xf32>
    %c17_i32 = arith.constant 17 : i32
    %41 = tpu.dynamic_rotate %39 by %c17_i32 dim 2 : vector<2x8x256xf32>, i32 -> vector<2x8x256xf32>
    %42 = vector.extract_strided_slice %7 {offsets = [0, 0], sizes = [1, 256], strides = [1, 1]} : vector<9x256xf32> to vector<1x256xf32>
    %43 = vector.shape_cast %42 : vector<1x256xf32> to vector<1x1x256xf32>
    %44 = vector.broadcast %43 : vector<1x1x256xf32> to vector<2x8x256xf32>
    %45 = arith.mulf %41, %44 : vector<2x8x256xf32>
    %46 = vector.extract_strided_slice %3 {offsets = [0, 0], sizes = [8, 1], strides = [1, 1]} : vector<8x9xf32> to vector<8x1xf32>
    %47 = vector.shape_cast %46 : vector<8x1xf32> to vector<1x8x1xf32>
    %48 = vector.broadcast %47 : vector<1x8x1xf32> to vector<2x8x256xf32>
    %49 = arith.mulf %48, %45 : vector<2x8x256xf32>
    %50 = vector.broadcast %40 : vector<1x8x1xf32> to vector<2x8x256xf32>
    %51 = arith.addf %50, %49 : vector<2x8x256xf32>
    %c16_i32 = arith.constant 16 : i32
    %52 = tpu.dynamic_rotate %39 by %c16_i32 dim 2 : vector<2x8x256xf32>, i32 -> vector<2x8x256xf32>
    %53 = vector.extract_strided_slice %7 {offsets = [1, 0], sizes = [1, 256], strides = [1, 1]} : vector<9x256xf32> to vector<1x256xf32>
    %54 = vector.shape_cast %53 : vector<1x256xf32> to vector<1x1x256xf32>
    %55 = vector.broadcast %54 : vector<1x1x256xf32> to vector<2x8x256xf32>
    %56 = arith.mulf %52, %55 : vector<2x8x256xf32>
    %57 = vector.extract_strided_slice %3 {offsets = [0, 1], sizes = [8, 1], strides = [1, 1]} : vector<8x9xf32> to vector<8x1xf32>
    %58 = vector.shape_cast %57 : vector<8x1xf32> to vector<1x8x1xf32>
    %59 = vector.broadcast %58 : vector<1x8x1xf32> to vector<2x8x256xf32>
    %60 = arith.mulf %59, %56 : vector<2x8x256xf32>
    %61 = arith.addf %51, %60 : vector<2x8x256xf32>
    %c15_i32 = arith.constant 15 : i32
    %62 = tpu.dynamic_rotate %39 by %c15_i32 dim 2 : vector<2x8x256xf32>, i32 -> vector<2x8x256xf32>
    %63 = vector.extract_strided_slice %7 {offsets = [2, 0], sizes = [1, 256], strides = [1, 1]} : vector<9x256xf32> to vector<1x256xf32>
    %64 = vector.shape_cast %63 : vector<1x256xf32> to vector<1x1x256xf32>
    %65 = vector.broadcast %64 : vector<1x1x256xf32> to vector<2x8x256xf32>
    %66 = arith.mulf %62, %65 : vector<2x8x256xf32>
    %67 = vector.extract_strided_slice %3 {offsets = [0, 2], sizes = [8, 1], strides = [1, 1]} : vector<8x9xf32> to vector<8x1xf32>
    %68 = vector.shape_cast %67 : vector<8x1xf32> to vector<1x8x1xf32>
    %69 = vector.broadcast %68 : vector<1x8x1xf32> to vector<2x8x256xf32>
    %70 = arith.mulf %69, %66 : vector<2x8x256xf32>
    %71 = arith.addf %61, %70 : vector<2x8x256xf32>
    %c1_i32 = arith.constant 1 : i32
    %72 = tpu.dynamic_rotate %39 by %c1_i32 dim 2 : vector<2x8x256xf32>, i32 -> vector<2x8x256xf32>
    %73 = vector.extract_strided_slice %7 {offsets = [3, 0], sizes = [1, 256], strides = [1, 1]} : vector<9x256xf32> to vector<1x256xf32>
    %74 = vector.shape_cast %73 : vector<1x256xf32> to vector<1x1x256xf32>
    %75 = vector.broadcast %74 : vector<1x1x256xf32> to vector<2x8x256xf32>
    %76 = arith.mulf %72, %75 : vector<2x8x256xf32>
    %77 = vector.extract_strided_slice %3 {offsets = [0, 3], sizes = [8, 1], strides = [1, 1]} : vector<8x9xf32> to vector<8x1xf32>
    %78 = vector.shape_cast %77 : vector<8x1xf32> to vector<1x8x1xf32>
    %79 = vector.broadcast %78 : vector<1x8x1xf32> to vector<2x8x256xf32>
    %80 = arith.mulf %79, %76 : vector<2x8x256xf32>
    %81 = arith.addf %71, %80 : vector<2x8x256xf32>
    %82 = vector.extract_strided_slice %3 {offsets = [0, 4], sizes = [8, 1], strides = [1, 1]} : vector<8x9xf32> to vector<8x1xf32>
    %83 = vector.shape_cast %82 : vector<8x1xf32> to vector<1x8x1xf32>
    %84 = vector.broadcast %83 : vector<1x8x1xf32> to vector<2x8x256xf32>
    %85 = arith.mulf %84, %39 : vector<2x8x256xf32>
    %86 = arith.addf %81, %85 : vector<2x8x256xf32>
    %c255_i32 = arith.constant 255 : i32
    %87 = tpu.dynamic_rotate %39 by %c255_i32 dim 2 : vector<2x8x256xf32>, i32 -> vector<2x8x256xf32>
    %88 = vector.extract_strided_slice %7 {offsets = [5, 0], sizes = [1, 256], strides = [1, 1]} : vector<9x256xf32> to vector<1x256xf32>
    %89 = vector.shape_cast %88 : vector<1x256xf32> to vector<1x1x256xf32>
    %90 = vector.broadcast %89 : vector<1x1x256xf32> to vector<2x8x256xf32>
    %91 = arith.mulf %87, %90 : vector<2x8x256xf32>
    %92 = vector.extract_strided_slice %3 {offsets = [0, 5], sizes = [8, 1], strides = [1, 1]} : vector<8x9xf32> to vector<8x1xf32>
    %93 = vector.shape_cast %92 : vector<8x1xf32> to vector<1x8x1xf32>
    %94 = vector.broadcast %93 : vector<1x8x1xf32> to vector<2x8x256xf32>
    %95 = arith.mulf %94, %91 : vector<2x8x256xf32>
    %96 = arith.addf %86, %95 : vector<2x8x256xf32>
    %c241_i32 = arith.constant 241 : i32
    %97 = tpu.dynamic_rotate %39 by %c241_i32 dim 2 : vector<2x8x256xf32>, i32 -> vector<2x8x256xf32>
    %98 = vector.extract_strided_slice %7 {offsets = [6, 0], sizes = [1, 256], strides = [1, 1]} : vector<9x256xf32> to vector<1x256xf32>
    %99 = vector.shape_cast %98 : vector<1x256xf32> to vector<1x1x256xf32>
    %100 = vector.broadcast %99 : vector<1x1x256xf32> to vector<2x8x256xf32>
    %101 = arith.mulf %97, %100 : vector<2x8x256xf32>
    %102 = vector.extract_strided_slice %3 {offsets = [0, 6], sizes = [8, 1], strides = [1, 1]} : vector<8x9xf32> to vector<8x1xf32>
    %103 = vector.shape_cast %102 : vector<8x1xf32> to vector<1x8x1xf32>
    %104 = vector.broadcast %103 : vector<1x8x1xf32> to vector<2x8x256xf32>
    %105 = arith.mulf %104, %101 : vector<2x8x256xf32>
    %106 = arith.addf %96, %105 : vector<2x8x256xf32>
    %c240_i32 = arith.constant 240 : i32
    %107 = tpu.dynamic_rotate %39 by %c240_i32 dim 2 : vector<2x8x256xf32>, i32 -> vector<2x8x256xf32>
    %108 = vector.extract_strided_slice %7 {offsets = [7, 0], sizes = [1, 256], strides = [1, 1]} : vector<9x256xf32> to vector<1x256xf32>
    %109 = vector.shape_cast %108 : vector<1x256xf32> to vector<1x1x256xf32>
    %110 = vector.broadcast %109 : vector<1x1x256xf32> to vector<2x8x256xf32>
    %111 = arith.mulf %107, %110 : vector<2x8x256xf32>
    %112 = vector.extract_strided_slice %3 {offsets = [0, 7], sizes = [8, 1], strides = [1, 1]} : vector<8x9xf32> to vector<8x1xf32>
    %113 = vector.shape_cast %112 : vector<8x1xf32> to vector<1x8x1xf32>
    %114 = vector.broadcast %113 : vector<1x8x1xf32> to vector<2x8x256xf32>
    %115 = arith.mulf %114, %111 : vector<2x8x256xf32>
    %116 = arith.addf %106, %115 : vector<2x8x256xf32>
    %c239_i32 = arith.constant 239 : i32
    %117 = tpu.dynamic_rotate %39 by %c239_i32 dim 2 : vector<2x8x256xf32>, i32 -> vector<2x8x256xf32>
    %118 = vector.extract_strided_slice %7 {offsets = [8, 0], sizes = [1, 256], strides = [1, 1]} : vector<9x256xf32> to vector<1x256xf32>
    %119 = vector.shape_cast %118 : vector<1x256xf32> to vector<1x1x256xf32>
    %120 = vector.broadcast %119 : vector<1x1x256xf32> to vector<2x8x256xf32>
    %121 = arith.mulf %117, %120 : vector<2x8x256xf32>
    %122 = vector.extract_strided_slice %3 {offsets = [0, 8], sizes = [8, 1], strides = [1, 1]} : vector<8x9xf32> to vector<8x1xf32>
    %123 = vector.shape_cast %122 : vector<8x1xf32> to vector<1x8x1xf32>
    %124 = vector.broadcast %123 : vector<1x8x1xf32> to vector<2x8x256xf32>
    %125 = arith.mulf %124, %121 : vector<2x8x256xf32>
    %126 = arith.addf %116, %125 : vector<2x8x256xf32>
    %cst_16 = arith.constant 0.000000e+00 : f32
    %127 = vector.broadcast %cst_16 : f32 to vector<2x8x256xf32>
    %128 = arith.maximumf %126, %127 : vector<2x8x256xf32>
    %129 = vector.shape_cast %6 : vector<4x1xf32> to vector<1x4x1xf32>
    %130 = vector.extract_strided_slice %5 {offsets = [0, 0], sizes = [4, 1], strides = [1, 1]} : vector<4x8xf32> to vector<4x1xf32>
    %131 = vector.shape_cast %130 : vector<4x1xf32> to vector<1x4x1xf32>
    %132 = vector.extract_strided_slice %128 {offsets = [0, 0, 0], sizes = [2, 1, 256], strides = [1, 1, 1]} : vector<2x8x256xf32> to vector<2x1x256xf32>
    %133 = vector.broadcast %131 : vector<1x4x1xf32> to vector<2x4x256xf32>
    %134 = vector.broadcast %132 : vector<2x1x256xf32> to vector<2x4x256xf32>
    %135 = arith.mulf %133, %134 : vector<2x4x256xf32>
    %136 = vector.broadcast %129 : vector<1x4x1xf32> to vector<2x4x256xf32>
    %137 = arith.addf %136, %135 : vector<2x4x256xf32>
    %138 = vector.extract_strided_slice %5 {offsets = [0, 1], sizes = [4, 1], strides = [1, 1]} : vector<4x8xf32> to vector<4x1xf32>
    %139 = vector.shape_cast %138 : vector<4x1xf32> to vector<1x4x1xf32>
    %140 = vector.extract_strided_slice %128 {offsets = [0, 1, 0], sizes = [2, 1, 256], strides = [1, 1, 1]} : vector<2x8x256xf32> to vector<2x1x256xf32>
    %141 = vector.broadcast %139 : vector<1x4x1xf32> to vector<2x4x256xf32>
    %142 = vector.broadcast %140 : vector<2x1x256xf32> to vector<2x4x256xf32>
    %143 = arith.mulf %141, %142 : vector<2x4x256xf32>
    %144 = arith.addf %137, %143 : vector<2x4x256xf32>
    %145 = vector.extract_strided_slice %5 {offsets = [0, 2], sizes = [4, 1], strides = [1, 1]} : vector<4x8xf32> to vector<4x1xf32>
    %146 = vector.shape_cast %145 : vector<4x1xf32> to vector<1x4x1xf32>
    %147 = vector.extract_strided_slice %128 {offsets = [0, 2, 0], sizes = [2, 1, 256], strides = [1, 1, 1]} : vector<2x8x256xf32> to vector<2x1x256xf32>
    %148 = vector.broadcast %146 : vector<1x4x1xf32> to vector<2x4x256xf32>
    %149 = vector.broadcast %147 : vector<2x1x256xf32> to vector<2x4x256xf32>
    %150 = arith.mulf %148, %149 : vector<2x4x256xf32>
    %151 = arith.addf %144, %150 : vector<2x4x256xf32>
    %152 = vector.extract_strided_slice %5 {offsets = [0, 3], sizes = [4, 1], strides = [1, 1]} : vector<4x8xf32> to vector<4x1xf32>
    %153 = vector.shape_cast %152 : vector<4x1xf32> to vector<1x4x1xf32>
    %154 = vector.extract_strided_slice %128 {offsets = [0, 3, 0], sizes = [2, 1, 256], strides = [1, 1, 1]} : vector<2x8x256xf32> to vector<2x1x256xf32>
    %155 = vector.broadcast %153 : vector<1x4x1xf32> to vector<2x4x256xf32>
    %156 = vector.broadcast %154 : vector<2x1x256xf32> to vector<2x4x256xf32>
    %157 = arith.mulf %155, %156 : vector<2x4x256xf32>
    %158 = arith.addf %151, %157 : vector<2x4x256xf32>
    %159 = vector.extract_strided_slice %5 {offsets = [0, 4], sizes = [4, 1], strides = [1, 1]} : vector<4x8xf32> to vector<4x1xf32>
    %160 = vector.shape_cast %159 : vector<4x1xf32> to vector<1x4x1xf32>
    %161 = vector.extract_strided_slice %128 {offsets = [0, 4, 0], sizes = [2, 1, 256], strides = [1, 1, 1]} : vector<2x8x256xf32> to vector<2x1x256xf32>
    %162 = vector.broadcast %160 : vector<1x4x1xf32> to vector<2x4x256xf32>
    %163 = vector.broadcast %161 : vector<2x1x256xf32> to vector<2x4x256xf32>
    %164 = arith.mulf %162, %163 : vector<2x4x256xf32>
    %165 = arith.addf %158, %164 : vector<2x4x256xf32>
    %166 = vector.extract_strided_slice %5 {offsets = [0, 5], sizes = [4, 1], strides = [1, 1]} : vector<4x8xf32> to vector<4x1xf32>
    %167 = vector.shape_cast %166 : vector<4x1xf32> to vector<1x4x1xf32>
    %168 = vector.extract_strided_slice %128 {offsets = [0, 5, 0], sizes = [2, 1, 256], strides = [1, 1, 1]} : vector<2x8x256xf32> to vector<2x1x256xf32>
    %169 = vector.broadcast %167 : vector<1x4x1xf32> to vector<2x4x256xf32>
    %170 = vector.broadcast %168 : vector<2x1x256xf32> to vector<2x4x256xf32>
    %171 = arith.mulf %169, %170 : vector<2x4x256xf32>
    %172 = arith.addf %165, %171 : vector<2x4x256xf32>
    %173 = vector.extract_strided_slice %5 {offsets = [0, 6], sizes = [4, 1], strides = [1, 1]} : vector<4x8xf32> to vector<4x1xf32>
    %174 = vector.shape_cast %173 : vector<4x1xf32> to vector<1x4x1xf32>
    %175 = vector.extract_strided_slice %128 {offsets = [0, 6, 0], sizes = [2, 1, 256], strides = [1, 1, 1]} : vector<2x8x256xf32> to vector<2x1x256xf32>
    %176 = vector.broadcast %174 : vector<1x4x1xf32> to vector<2x4x256xf32>
    %177 = vector.broadcast %175 : vector<2x1x256xf32> to vector<2x4x256xf32>
    %178 = arith.mulf %176, %177 : vector<2x4x256xf32>
    %179 = arith.addf %172, %178 : vector<2x4x256xf32>
    %180 = vector.extract_strided_slice %5 {offsets = [0, 7], sizes = [4, 1], strides = [1, 1]} : vector<4x8xf32> to vector<4x1xf32>
    %181 = vector.shape_cast %180 : vector<4x1xf32> to vector<1x4x1xf32>
    %182 = vector.extract_strided_slice %128 {offsets = [0, 7, 0], sizes = [2, 1, 256], strides = [1, 1, 1]} : vector<2x8x256xf32> to vector<2x1x256xf32>
    %183 = vector.broadcast %181 : vector<1x4x1xf32> to vector<2x4x256xf32>
    %184 = vector.broadcast %182 : vector<2x1x256xf32> to vector<2x4x256xf32>
    %185 = arith.mulf %183, %184 : vector<2x4x256xf32>
    %186 = arith.addf %179, %185 : vector<2x4x256xf32>
    %187 = arith.addf %186, %0 : vector<2x4x256xf32>
    %c0_17 = arith.constant 0 : index
    %c0_18 = arith.constant 0 : index
    %c0_19 = arith.constant 0 : index
    %188 = vector.load %arg9[%c0_17, %c0_18, %c0_19] : memref<2x4x256xf32, #tpu.memory_space<vmem>>, vector<2x4x256xf32>
    tpu.vector_store %arg9[%c0_17, %c0_18, %c0_19], %187 {strides = array<i32>} : memref<2x4x256xf32, #tpu.memory_space<vmem>>, vector<2x4x256xf32>,
    return
  }
  func.func @transform_0(%arg0: i32) -> (i32, i32, i32) {
    %c0_i32 = arith.constant 0 : i32
    %c0_i32_0 = arith.constant 0 : i32
    %c0_i32_1 = arith.constant 0 : i32
    return %arg0, %c0_i32, %c0_i32_0 : i32, i32, i32
  }
  func.func @transform_1(%arg0: i32) -> (i32, i32) {
    %c0_i32 = arith.constant 0 : i32
    %c0_i32_0 = arith.constant 0 : i32
    %c0_i32_1 = arith.constant 0 : i32
    return %c0_i32, %c0_i32_0 : i32, i32
  }
  func.func @transform_2(%arg0: i32) -> (i32, i32) {
    %c0_i32 = arith.constant 0 : i32
    %c0_i32_0 = arith.constant 0 : i32
    %c0_i32_1 = arith.constant 0 : i32
    return %c0_i32, %c0_i32_0 : i32, i32
  }
  func.func @transform_3(%arg0: i32) -> (i32, i32) {
    %c0_i32 = arith.constant 0 : i32
    %c0_i32_0 = arith.constant 0 : i32
    %c0_i32_1 = arith.constant 0 : i32
    return %c0_i32, %c0_i32_0 : i32, i32
  }
  func.func @transform_4(%arg0: i32) -> (i32, i32) {
    %c0_i32 = arith.constant 0 : i32
    %c0_i32_0 = arith.constant 0 : i32
    %c0_i32_1 = arith.constant 0 : i32
    return %c0_i32, %c0_i32_0 : i32, i32
  }
  func.func @transform_5(%arg0: i32) -> (i32, i32) {
    %c0_i32 = arith.constant 0 : i32
    %c0_i32_0 = arith.constant 0 : i32
    %c0_i32_1 = arith.constant 0 : i32
    return %c0_i32, %c0_i32_0 : i32, i32
  }
  func.func @transform_6(%arg0: i32) -> (i32, i32) {
    %c0_i32 = arith.constant 0 : i32
    %c0_i32_0 = arith.constant 0 : i32
    %c0_i32_1 = arith.constant 0 : i32
    return %c0_i32, %c0_i32_0 : i32, i32
  }
  func.func @transform_7(%arg0: i32) -> (i32, i32) {
    %c0_i32 = arith.constant 0 : i32
    %c0_i32_0 = arith.constant 0 : i32
    %c0_i32_1 = arith.constant 0 : i32
    return %c0_i32, %c0_i32_0 : i32, i32
  }
  func.func @transform_8(%arg0: i32) -> (i32, i32, i32) {
    %c0_i32 = arith.constant 0 : i32
    %c0_i32_0 = arith.constant 0 : i32
    %c0_i32_1 = arith.constant 0 : i32
    return %arg0, %c0_i32, %c0_i32_0 : i32, i32, i32
  }
}

</mosaic_0001>

<llo_original>
// kernel: tpu_custom_call.1
$region0: #{tpu_custom_call.1}
  #allocation0 [shape = 'u32[]', space=smem, size = 0x4, offset = 0x4, fixed_abs, tag = 'smem constant byte address 0x4 - core index']
  #allocation1 [shape = 'u32[144,128]{1,0:T(1,128)}', space=vmem, size = 0x12000, scoped, tag = 'internal scratch']
  %s0 = inlined_call_operand.vmem [shape: f32[2,4,256], index: 0, kind: input, shape index: {}]
  %s1 = inlined_call_operand.vmem [shape: f32[8,4], index: 1, kind: input, shape index: {}]
  %s2 = inlined_call_operand.vmem [shape: f32[8,1], index: 2, kind: input, shape index: {}]
  %s3 = inlined_call_operand.vmem [shape: f32[8,9], index: 3, kind: input, shape index: {}]
  %s4 = inlined_call_operand.vmem [shape: f32[8,1], index: 4, kind: input, shape index: {}]
  %s5 = inlined_call_operand.vmem [shape: f32[4,8], index: 5, kind: input, shape index: {}]
  %s6 = inlined_call_operand.vmem [shape: f32[4,1], index: 6, kind: input, shape index: {}]
  %s7 = inlined_call_operand.vmem [shape: f32[9,256], index: 7, kind: input, shape index: {}]
  %s8 = inlined_call_operand.hbm [shape: f32[2,4,256], index: 8, kind: output, shape index: {}]
  %s9 = sld [smem:[#allocation0]]
  $region42: #{tpu_custom_call.1} parent=0
    _
  %s11 = ssub.s32 1, %s9
  %s12 = scalar_select 0, %s11, %s9
  $region1: #{tpu_custom_call.1} parent=0
    #allocation2 [shape = 'u8[8192]{0}', space=vmem, size = 0x2000, scoped, tag = 'output window, operand 0, single buffered']
    #allocation3 [shape = 's32[1]{0}', space=sflag, size = 0x4, scoped, tag = 'scoped memory for tpu_custom_call.1']
    %13 = vsyncpa [#allocation3], 0
    // Predicated region
    $region2: #{tpu_custom_call.1} parent=1 // pred_check
      _
    $region3: #{tpu_custom_call.1} parent=1 // pred_check_branch
      %15 = sbr.rel (0) target = $region5
    $region4: #{tpu_custom_call.1} parent=1 // pred_region
      _
    $region5: #{tpu_custom_call.1} parent=1 // pred_fallthru
      _
    // Predicated region
    $region6: #{tpu_custom_call.1} parent=1 // pred_check
      _
    $region7: #{tpu_custom_call.1} parent=1 // pred_check_branch
      %17 = sbr.rel (0) target = $region9
    $region8: #{tpu_custom_call.1} parent=1 // pred_region
      _
    $region9: #{tpu_custom_call.1} parent=1 // pred_fallthru
      _
    // Predicated region
    $region10: #{tpu_custom_call.1} parent=1 // pred_check
      _
    $region11: #{tpu_custom_call.1} parent=1 // pred_check_branch
      %19 = sbr.rel (0) target = $region13
    $region12: #{tpu_custom_call.1} parent=1 // pred_region
      _
    $region13: #{tpu_custom_call.1} parent=1 // pred_fallthru
      _
    // Predicated region
    $region14: #{tpu_custom_call.1} parent=1 // pred_check
      _
    $region15: #{tpu_custom_call.1} parent=1 // pred_check_branch
      %21 = sbr.rel (0) target = $region17
    $region16: #{tpu_custom_call.1} parent=1 // pred_region
      _
    $region17: #{tpu_custom_call.1} parent=1 // pred_fallthru
      _
    // Predicated region
    $region18: #{tpu_custom_call.1} parent=1 // pred_check
      _
    $region19: #{tpu_custom_call.1} parent=1 // pred_check_branch
      %23 = sbr.rel (0) target = $region21
    $region20: #{tpu_custom_call.1} parent=1 // pred_region
      _
    $region21: #{tpu_custom_call.1} parent=1 // pred_fallthru
      _
    // Predicated region
    $region22: #{tpu_custom_call.1} parent=1 // pred_check
      _
    $region23: #{tpu_custom_call.1} parent=1 // pred_check_branch
      %25 = sbr.rel (0) target = $region25
    $region24: #{tpu_custom_call.1} parent=1 // pred_region
      _
    $region25: #{tpu_custom_call.1} parent=1 // pred_fallthru
      _
    // Predicated region
    $region26: #{tpu_custom_call.1} parent=1 // pred_check
      _
    $region27: #{tpu_custom_call.1} parent=1 // pred_check_branch
      %27 = sbr.rel (0) target = $region29
    $region28: #{tpu_custom_call.1} parent=1 // pred_region
      _
    $region29: #{tpu_custom_call.1} parent=1 // pred_fallthru
      _
    // Predicated region
    $region30: #{tpu_custom_call.1} parent=1 // pred_check
      _
    $region31: #{tpu_custom_call.1} parent=1 // pred_check_branch
      %29 = sbr.rel (0) target = $region33
    $region32: #{tpu_custom_call.1} parent=1 // pred_region
      _
    $region33: #{tpu_custom_call.1} parent=1 // pred_fallthru
      _
    %v30 = vld [vmem:[%s0] sm:$0xff]
    %v31 = vld [vmem:[%s0 + $0x8] sm:$0xff]
    %v32 = vld [vmem:[%s1] sm:$0xff]
    %v33 = vld [vmem:[%s2] sm:$0xff]
    %v34 = vld [vmem:[%s3] sm:$0xff]
    %v35 = vld [vmem:[%s4] sm:$0xff]
    %v36 = vld [vmem:[%s5] sm:$0xf]
    %v37 = vld [vmem:[%s6] sm:$0xf]
    %v38 = vld [vmem:[%s7] sm:$0xff]
    %v39 = vld [vmem:[%s7 + $0x8] sm:$0xff]
    %v40 = vld [vmem:[%s7 + $0x10] sm:$0x1]
    %v41 = vld [vmem:[%s7 + $0x18] sm:$0x1]
    %43 = vset.pattern.permute.xlu0 0
    %44 = vperm.xlu0 %43, %v32
    %v45 = vpop.permute.xlu0 %44
    %v49 = vlaneseq
    %v50 = vshrl.u32 %v49, 7
    %v51 = vsub.s32 0, %v50
    %v52 = vrot.slane %v30, %v51
    %v53 = vlaneseq
    %v54 = vshrl.u32 %v53, 7
    %v55 = vsub.s32 4, %v54
    %v56 = vrot.slane %v30, %v55
    %v57 = vlaneseq
    %v58 = vshrl.u32 %v57, 7
    %v59 = vsub.s32 0, %v58
    %v60 = vrot.slane %v31, %v59
    %v61 = vlaneseq
    %v62 = vshrl.u32 %v61, 7
    %v63 = vsub.s32 4, %v62
    %v64 = vrot.slane %v31, %v63
    %v69 = vlaneseq
    %v70 = vshrl.u32 %v69, 7
    %v71 = vsub.s32 0, %v70
    %v72 = vrot.slane %v52, %v71
    %v73 = vlaneseq
    %v74 = vshrl.u32 %v73, 7
    %v75 = vsub.s32 0, %v74
    %v76 = vrot.slane %v56, %v75
    %v77 = vlaneseq
    %v78 = vshrl.u32 %v77, 7
    %v79 = vsub.s32 0, %v78
    %v80 = vrot.slane %v60, %v79
    %v81 = vlaneseq
    %v82 = vshrl.u32 %v81, 7
    %v83 = vsub.s32 0, %v82
    %v84 = vrot.slane %v64, %v83
    %v85 = vmul.f32 %v45, %v72
    %v86 = vmul.f32 %v45, %v76
    %v87 = vmul.f32 %v45, %v80
    %v88 = vmul.f32 %v45, %v84
    %90 = vset.pattern.permute.xlu0 0
    %91 = vperm.xlu0 %90, %v33
    %v92 = vpop.permute.xlu0 %91
    %v94 = vadd.f32 %v92, %v85
    %v95 = vadd.f32 %v92, %v86
    %v96 = vadd.f32 %v92, %v87
    %v97 = vadd.f32 %v92, %v88
    %98 = vset.pattern.permute.xlu0 1
    %99 = vperm.xlu0 %98, %v32
    %v100 = vpop.permute.xlu0 %99
    %v102 = vlaneseq
    %v103 = vshrl.u32 %v102, 7
    %v104 = vsub.s32 1, %v103
    %v105 = vrot.slane %v30, %v104
    %v106 = vlaneseq
    %v107 = vshrl.u32 %v106, 7
    %v108 = vsub.s32 5, %v107
    %v109 = vrot.slane %v30, %v108
    %v110 = vlaneseq
    %v111 = vshrl.u32 %v110, 7
    %v112 = vsub.s32 1, %v111
    %v113 = vrot.slane %v31, %v112
    %v114 = vlaneseq
    %v115 = vshrl.u32 %v114, 7
    %v116 = vsub.s32 5, %v115
    %v117 = vrot.slane %v31, %v116
    %v122 = vlaneseq
    %v123 = vshrl.u32 %v122, 7
    %v124 = vsub.s32 1, %v123
    %v125 = vrot.slane %v105, %v124
    %v126 = vlaneseq
    %v127 = vshrl.u32 %v126, 7
    %v128 = vsub.s32 1, %v127
    %v129 = vrot.slane %v109, %v128
    %v130 = vlaneseq
    %v131 = vshrl.u32 %v130, 7
    %v132 = vsub.s32 1, %v131
    %v133 = vrot.slane %v113, %v132
    %v134 = vlaneseq
    %v135 = vshrl.u32 %v134, 7
    %v136 = vsub.s32 1, %v135
    %v137 = vrot.slane %v117, %v136
    %v138 = vmul.f32 %v100, %v125
    %v139 = vmul.f32 %v100, %v129
    %v140 = vmul.f32 %v100, %v133
    %v141 = vmul.f32 %v100, %v137
    %v142 = vadd.f32 %v94, %v138
    %v143 = vadd.f32 %v95, %v139
    %v144 = vadd.f32 %v96, %v140
    %v145 = vadd.f32 %v97, %v141
    %146 = vset.pattern.permute.xlu0 2
    %147 = vperm.xlu0 %146, %v32
    %v148 = vpop.permute.xlu0 %147
    %v150 = vlaneseq
    %v151 = vshrl.u32 %v150, 7
    %v152 = vsub.s32 2, %v151
    %v153 = vrot.slane %v30, %v152
    %v154 = vlaneseq
    %v155 = vshrl.u32 %v154, 7
    %v156 = vsub.s32 6, %v155
    %v157 = vrot.slane %v30, %v156
    %v158 = vlaneseq
    %v159 = vshrl.u32 %v158, 7
    %v160 = vsub.s32 2, %v159
    %v161 = vrot.slane %v31, %v160
    %v162 = vlaneseq
    %v163 = vshrl.u32 %v162, 7
    %v164 = vsub.s32 6, %v163
    %v165 = vrot.slane %v31, %v164
    %v170 = vlaneseq
    %v171 = vshrl.u32 %v170, 7
    %v172 = vsub.s32 2, %v171
    %v173 = vrot.slane %v153, %v172
    %v174 = vlaneseq
    %v175 = vshrl.u32 %v174, 7
    %v176 = vsub.s32 2, %v175
    %v177 = vrot.slane %v157, %v176
    %v178 = vlaneseq
    %v179 = vshrl.u32 %v178, 7
    %v180 = vsub.s32 2, %v179
    %v181 = vrot.slane %v161, %v180
    %v182 = vlaneseq
    %v183 = vshrl.u32 %v182, 7
    %v184 = vsub.s32 2, %v183
    %v185 = vrot.slane %v165, %v184
    %v186 = vmul.f32 %v148, %v173
    %v187 = vmul.f32 %v148, %v177
    %v188 = vmul.f32 %v148, %v181
    %v189 = vmul.f32 %v148, %v185
    %v190 = vadd.f32 %v142, %v186
    %v191 = vadd.f32 %v143, %v187
    %v192 = vadd.f32 %v144, %v188
    %v193 = vadd.f32 %v145, %v189
    %194 = vset.pattern.permute.xlu0 3
    %195 = vperm.xlu0 %194, %v32
    %v196 = vpop.permute.xlu0 %195
    %v198 = vlaneseq
    %v199 = vshrl.u32 %v198, 7
    %v200 = vsub.s32 3, %v199
    %v201 = vrot.slane %v30, %v200
    %v202 = vlaneseq
    %v203 = vshrl.u32 %v202, 7
    %v204 = vsub.s32 7, %v203
    %v205 = vrot.slane %v30, %v204
    %v206 = vlaneseq
    %v207 = vshrl.u32 %v206, 7
    %v208 = vsub.s32 3, %v207
    %v209 = vrot.slane %v31, %v208
    %v210 = vlaneseq
    %v211 = vshrl.u32 %v210, 7
    %v212 = vsub.s32 7, %v211
    %v213 = vrot.slane %v31, %v212
    %v218 = vlaneseq
    %v219 = vshrl.u32 %v218, 7
    %v220 = vsub.s32 3, %v219
    %v221 = vrot.slane %v201, %v220
    %v222 = vlaneseq
    %v223 = vshrl.u32 %v222, 7
    %v224 = vsub.s32 3, %v223
    %v225 = vrot.slane %v205, %v224
    %v226 = vlaneseq
    %v227 = vshrl.u32 %v226, 7
    %v228 = vsub.s32 3, %v227
    %v229 = vrot.slane %v209, %v228
    %v230 = vlaneseq
    %v231 = vshrl.u32 %v230, 7
    %v232 = vsub.s32 3, %v231
    %v233 = vrot.slane %v213, %v232
    %v234 = vmul.f32 %v196, %v221
    %v235 = vmul.f32 %v196, %v225
    %v236 = vmul.f32 %v196, %v229
    %v237 = vmul.f32 %v196, %v233
    %v238 = vadd.f32 %v190, %v234
    %v239 = vadd.f32 %v191, %v235
    %v240 = vadd.f32 %v192, %v236
    %v241 = vadd.f32 %v193, %v237
    %v242 = vmax.f32 %v238, 0.0
    %v243 = vmax.f32 %v239, 0.0
    %v244 = vmax.f32 %v240, 0.0
    %v245 = vmax.f32 %v241, 0.0
    %246 = vrot.lane.b32.xlu0 %v242, 17
    %v247 = vpop.permute.xlu0 %246
    %248 = vrot.lane.b32.xlu0 %v244, 17
    %v249 = vpop.permute.xlu0 %248
    %250 = vrot.lane.b32.xlu0 %v243, 17
    %v251 = vpop.permute.xlu0 %250
    %252 = vrot.lane.b32.xlu0 %v245, 17
    %v253 = vpop.permute.xlu0 %252
    %v254 = vlaneseq
    %v255 = vand.u32 %v254, 127
    %vm256 = vcmp.lt.s32.totalorder %v255, 17
    %v257 = vsel %vm256, %v247, %v251
    %v258 = vsel %vm256, %v249, %v253
    %v259 = vsel %vm256, %v251, %v247
    %v260 = vsel %vm256, %v253, %v249
    %v261 = vlaneseq
    %v262 = vshrl.u32 %v261, 7
    %v263 = vsub.s32 0, %v262
    %v264 = vrot.slane %v38, %v263
    %v265 = vlaneseq
    %v266 = vshrl.u32 %v265, 7
    %v267 = vsub.s32 0, %v266
    %v268 = vrot.slane %v39, %v267
    %v269 = vmul.f32 %v259, %v264
    %v270 = vmul.f32 %v257, %v268
    %v271 = vmul.f32 %v260, %v264
    %v272 = vmul.f32 %v258, %v268
    %274 = vset.pattern.permute.xlu0 0
    %275 = vperm.xlu0 %274, %v34
    %v276 = vpop.permute.xlu0 %275
    %v278 = vmul.f32 %v276, %v269
    %v279 = vmul.f32 %v276, %v270
    %v280 = vmul.f32 %v276, %v271
    %v281 = vmul.f32 %v276, %v272
    %283 = vset.pattern.permute.xlu0 0
    %284 = vperm.xlu0 %283, %v35
    %v285 = vpop.permute.xlu0 %284
    %v287 = vadd.f32 %v285, %v278
    %v288 = vadd.f32 %v285, %v279
    %v289 = vadd.f32 %v285, %v280
    %v290 = vadd.f32 %v285, %v281
    %291 = vrot.lane.b32.xlu0 %v242, 16
    %v292 = vpop.permute.xlu0 %291
    %293 = vrot.lane.b32.xlu0 %v244, 16
    %v294 = vpop.permute.xlu0 %293
    %295 = vrot.lane.b32.xlu0 %v243, 16
    %v296 = vpop.permute.xlu0 %295
    %297 = vrot.lane.b32.xlu0 %v245, 16
    %v298 = vpop.permute.xlu0 %297
    %vm299 = vcmp.lt.s32.totalorder %v255, 16
    %v300 = vsel %vm299, %v292, %v296
    %v301 = vsel %vm299, %v294, %v298
    %v302 = vsel %vm299, %v296, %v292
    %v303 = vsel %vm299, %v298, %v294
    %v304 = vlaneseq
    %v305 = vshrl.u32 %v304, 7
    %v306 = vsub.s32 1, %v305
    %v307 = vrot.slane %v38, %v306
    %v308 = vlaneseq
    %v309 = vshrl.u32 %v308, 7
    %v310 = vsub.s32 1, %v309
    %v311 = vrot.slane %v39, %v310
    %v312 = vmul.f32 %v302, %v307
    %v313 = vmul.f32 %v300, %v311
    %v314 = vmul.f32 %v303, %v307
    %v315 = vmul.f32 %v301, %v311
    %316 = vset.pattern.permute.xlu0 1
    %317 = vperm.xlu0 %316, %v34
    %v318 = vpop.permute.xlu0 %317
    %v320 = vmul.f32 %v318, %v312
    %v321 = vmul.f32 %v318, %v313
    %v322 = vmul.f32 %v318, %v314
    %v323 = vmul.f32 %v318, %v315
    %v324 = vadd.f32 %v287, %v320
    %v325 = vadd.f32 %v288, %v321
    %v326 = vadd.f32 %v289, %v322
    %v327 = vadd.f32 %v290, %v323
    %328 = vrot.lane.b32.xlu0 %v242, 15
    %v329 = vpop.permute.xlu0 %328
    %330 = vrot.lane.b32.xlu0 %v244, 15
    %v331 = vpop.permute.xlu0 %330
    %332 = vrot.lane.b32.xlu0 %v243, 15
    %v333 = vpop.permute.xlu0 %332
    %334 = vrot.lane.b32.xlu0 %v245, 15
    %v335 = vpop.permute.xlu0 %334
    %vm336 = vcmp.lt.s32.totalorder %v255, 15
    %v337 = vsel %vm336, %v329, %v333
    %v338 = vsel %vm336, %v331, %v335
    %v339 = vsel %vm336, %v333, %v329
    %v340 = vsel %vm336, %v335, %v331
    %v341 = vlaneseq
    %v342 = vshrl.u32 %v341, 7
    %v343 = vsub.s32 2, %v342
    %v344 = vrot.slane %v38, %v343
    %v345 = vlaneseq
    %v346 = vshrl.u32 %v345, 7
    %v347 = vsub.s32 2, %v346
    %v348 = vrot.slane %v39, %v347
    %v349 = vmul.f32 %v339, %v344
    %v350 = vmul.f32 %v337, %v348
    %v351 = vmul.f32 %v340, %v344
    %v352 = vmul.f32 %v338, %v348
    %353 = vset.pattern.permute.xlu0 2
    %354 = vperm.xlu0 %353, %v34
    %v355 = vpop.permute.xlu0 %354
    %v357 = vmul.f32 %v355, %v349
    %v358 = vmul.f32 %v355, %v350
    %v359 = vmul.f32 %v355, %v351
    %v360 = vmul.f32 %v355, %v352
    %v361 = vadd.f32 %v324, %v357
    %v362 = vadd.f32 %v325, %v358
    %v363 = vadd.f32 %v326, %v359
    %v364 = vadd.f32 %v327, %v360
    %365 = vrot.lane.b32.xlu0 %v242, 1
    %v366 = vpop.permute.xlu0 %365
    %367 = vrot.lane.b32.xlu0 %v244, 1
    %v368 = vpop.permute.xlu0 %367
    %369 = vrot.lane.b32.xlu0 %v243, 1
    %v370 = vpop.permute.xlu0 %369
    %371 = vrot.lane.b32.xlu0 %v245, 1
    %v372 = vpop.permute.xlu0 %371
    %vm373 = vcmp.lt.s32.totalorder %v255, 1
    %v374 = vsel %vm373, %v366, %v370
    %v375 = vsel %vm373, %v368, %v372
    %v376 = vsel %vm373, %v370, %v366
    %v377 = vsel %vm373, %v372, %v368
    %v378 = vlaneseq
    %v379 = vshrl.u32 %v378, 7
    %v380 = vsub.s32 3, %v379
    %v381 = vrot.slane %v38, %v380
    %v382 = vlaneseq
    %v383 = vshrl.u32 %v382, 7
    %v384 = vsub.s32 3, %v383
    %v385 = vrot.slane %v39, %v384
    %v386 = vmul.f32 %v376, %v381
    %v387 = vmul.f32 %v374, %v385
    %v388 = vmul.f32 %v377, %v381
    %v389 = vmul.f32 %v375, %v385
    %390 = vset.pattern.permute.xlu0 3
    %391 = vperm.xlu0 %390, %v34
    %v392 = vpop.permute.xlu0 %391
    %v394 = vmul.f32 %v392, %v386
    %v395 = vmul.f32 %v392, %v387
    %v396 = vmul.f32 %v392, %v388
    %v397 = vmul.f32 %v392, %v389
    %v398 = vadd.f32 %v361, %v394
    %v399 = vadd.f32 %v362, %v395
    %v400 = vadd.f32 %v363, %v396
    %v401 = vadd.f32 %v364, %v397
    %402 = vset.pattern.permute.xlu0 4
    %403 = vperm.xlu0 %402, %v34
    %v404 = vpop.permute.xlu0 %403
    %v406 = vmul.f32 %v404, %v242
    %v407 = vmul.f32 %v404, %v243
    %v408 = vmul.f32 %v404, %v244
    %v409 = vmul.f32 %v404, %v245
    %v410 = vadd.f32 %v398, %v406
    %v411 = vadd.f32 %v399, %v407
    %v412 = vadd.f32 %v400, %v408
    %v413 = vadd.f32 %v401, %v409
    %414 = vrot.lane.b32.xlu0 %v242, 127
    %v415 = vpop.permute.xlu0 %414
    %416 = vrot.lane.b32.xlu0 %v244, 127
    %v417 = vpop.permute.xlu0 %416
    %418 = vrot.lane.b32.xlu0 %v243, 127
    %v419 = vpop.permute.xlu0 %418
    %420 = vrot.lane.b32.xlu0 %v245, 127
    %v421 = vpop.permute.xlu0 %420
    %vm422 = vcmp.lt.s32.totalorder %v255, 127
    %v423 = vsel %vm422, %v415, %v419
    %v424 = vsel %vm422, %v417, %v421
    %v425 = vsel %vm422, %v419, %v415
    %v426 = vsel %vm422, %v421, %v417
    %v427 = vlaneseq
    %v428 = vshrl.u32 %v427, 7
    %v429 = vsub.s32 5, %v428
    %v430 = vrot.slane %v38, %v429
    %v431 = vlaneseq
    %v432 = vshrl.u32 %v431, 7
    %v433 = vsub.s32 5, %v432
    %v434 = vrot.slane %v39, %v433
    %v435 = vmul.f32 %v423, %v430
    %v436 = vmul.f32 %v425, %v434
    %v437 = vmul.f32 %v424, %v430
    %v438 = vmul.f32 %v426, %v434
    %439 = vset.pattern.permute.xlu0 5
    %440 = vperm.xlu0 %439, %v34
    %v441 = vpop.permute.xlu0 %440
    %v443 = vmul.f32 %v441, %v435
    %v444 = vmul.f32 %v441, %v436
    %v445 = vmul.f32 %v441, %v437
    %v446 = vmul.f32 %v441, %v438
    %v447 = vadd.f32 %v410, %v443
    %v448 = vadd.f32 %v411, %v444
    %v449 = vadd.f32 %v412, %v445
    %v450 = vadd.f32 %v413, %v446
    %451 = vrot.lane.b32.xlu0 %v242, 113
    %v452 = vpop.permute.xlu0 %451
    %453 = vrot.lane.b32.xlu0 %v244, 113
    %v454 = vpop.permute.xlu0 %453
    %455 = vrot.lane.b32.xlu0 %v243, 113
    %v456 = vpop.permute.xlu0 %455
    %457 = vrot.lane.b32.xlu0 %v245, 113
    %v458 = vpop.permute.xlu0 %457
    %vm459 = vcmp.lt.s32.totalorder %v255, 113
    %v460 = vsel %vm459, %v452, %v456
    %v461 = vsel %vm459, %v454, %v458
    %v462 = vsel %vm459, %v456, %v452
    %v463 = vsel %vm459, %v458, %v454
    %v464 = vlaneseq
    %v465 = vshrl.u32 %v464, 7
    %v466 = vsub.s32 6, %v465
    %v467 = vrot.slane %v38, %v466
    %v468 = vlaneseq
    %v469 = vshrl.u32 %v468, 7
    %v470 = vsub.s32 6, %v469
    %v471 = vrot.slane %v39, %v470
    %v472 = vmul.f32 %v460, %v467
    %v473 = vmul.f32 %v462, %v471
    %v474 = vmul.f32 %v461, %v467
    %v475 = vmul.f32 %v463, %v471
    %476 = vset.pattern.permute.xlu0 6
    %477 = vperm.xlu0 %476, %v34
    %v478 = vpop.permute.xlu0 %477
    %v480 = vmul.f32 %v478, %v472
    %v481 = vmul.f32 %v478, %v473
    %v482 = vmul.f32 %v478, %v474
    %v483 = vmul.f32 %v478, %v475
    %v484 = vadd.f32 %v447, %v480
    %v485 = vadd.f32 %v448, %v481
    %v486 = vadd.f32 %v449, %v482
    %v487 = vadd.f32 %v450, %v483
    %488 = vrot.lane.b32.xlu0 %v242, 112
    %v489 = vpop.permute.xlu0 %488
    %490 = vrot.lane.b32.xlu0 %v244, 112
    %v491 = vpop.permute.xlu0 %490
    %492 = vrot.lane.b32.xlu0 %v243, 112
    %v493 = vpop.permute.xlu0 %492
    %494 = vrot.lane.b32.xlu0 %v245, 112
    %v495 = vpop.permute.xlu0 %494
    %vm496 = vcmp.lt.s32.totalorder %v255, 112
    %v497 = vsel %vm496, %v489, %v493
    %v498 = vsel %vm496, %v491, %v495
    %v499 = vsel %vm496, %v493, %v489
    %v500 = vsel %vm496, %v495, %v491
    %v501 = vlaneseq
    %v502 = vshrl.u32 %v501, 7
    %v503 = vsub.s32 7, %v502
    %v504 = vrot.slane %v38, %v503
    %v505 = vlaneseq
    %v506 = vshrl.u32 %v505, 7
    %v507 = vsub.s32 7, %v506
    %v508 = vrot.slane %v39, %v507
    %v509 = vmul.f32 %v497, %v504
    %v510 = vmul.f32 %v499, %v508
    %v511 = vmul.f32 %v498, %v504
    %v512 = vmul.f32 %v500, %v508
    %513 = vset.pattern.permute.xlu0 7
    %514 = vperm.xlu0 %513, %v34
    %v515 = vpop.permute.xlu0 %514
    %v517 = vmul.f32 %v515, %v509
    %v518 = vmul.f32 %v515, %v510
    %v519 = vmul.f32 %v515, %v511
    %v520 = vmul.f32 %v515, %v512
    %v521 = vadd.f32 %v484, %v517
    %v522 = vadd.f32 %v485, %v518
    %v523 = vadd.f32 %v486, %v519
    %v524 = vadd.f32 %v487, %v520
    %525 = vrot.lane.b32.xlu0 %v242, 111
    %v526 = vpop.permute.xlu0 %525
    %527 = vrot.lane.b32.xlu0 %v244, 111
    %v528 = vpop.permute.xlu0 %527
    %529 = vrot.lane.b32.xlu0 %v243, 111
    %v530 = vpop.permute.xlu0 %529
    %531 = vrot.lane.b32.xlu0 %v245, 111
    %v532 = vpop.permute.xlu0 %531
    %vm533 = vcmp.lt.s32.totalorder %v255, 111
    %v534 = vsel %vm533, %v526, %v530
    %v535 = vsel %vm533, %v528, %v532
    %v536 = vsel %vm533, %v530, %v526
    %v537 = vsel %vm533, %v532, %v528
    %v538 = vlaneseq
    %v539 = vshrl.u32 %v538, 7
    %v540 = vsub.s32 0, %v539
    %v541 = vrot.slane %v40, %v540
    %v542 = vlaneseq
    %v543 = vshrl.u32 %v542, 7
    %v544 = vsub.s32 0, %v543
    %v545 = vrot.slane %v41, %v544
    %v546 = vmul.f32 %v534, %v541
    %v547 = vmul.f32 %v536, %v545
    %v548 = vmul.f32 %v535, %v541
    %v549 = vmul.f32 %v537, %v545
    %550 = vset.pattern.permute.xlu0 8
    %551 = vperm.xlu0 %550, %v34
    %v552 = vpop.permute.xlu0 %551
    %v554 = vmul.f32 %v552, %v546
    %v555 = vmul.f32 %v552, %v547
    %v556 = vmul.f32 %v552, %v548
    %v557 = vmul.f32 %v552, %v549
    %v558 = vadd.f32 %v521, %v554
    %v559 = vadd.f32 %v522, %v555
    %v560 = vadd.f32 %v523, %v556
    %v561 = vadd.f32 %v524, %v557
    %v562 = vmax.f32 %v558, 0.0
    %v563 = vmax.f32 %v559, 0.0
    %v564 = vmax.f32 %v560, 0.0
    %v565 = vmax.f32 %v561, 0.0
    %567 = vset.pattern.permute.xlu0 0
    %568 = vperm.xlu0 %567, %v36
    %v569 = vpop.permute.xlu0 %568
    %v571 = vlaneseq
    %v572 = vshrl.u32 %v571, 7
    %v573 = vsub.s32 0, %v572
    %v574 = vrot.slane %v562, %v573
    %v575 = vlaneseq
    %v576 = vshrl.u32 %v575, 7
    %v577 = vsub.s32 0, %v576
    %v578 = vrot.slane %v563, %v577
    %v579 = vlaneseq
    %v580 = vshrl.u32 %v579, 7
    %v581 = vsub.s32 0, %v580
    %v582 = vrot.slane %v564, %v581
    %v583 = vlaneseq
    %v584 = vshrl.u32 %v583, 7
    %v585 = vsub.s32 0, %v584
    %v586 = vrot.slane %v565, %v585
    %v587 = vmul.f32 %v569, %v574
    %v588 = vmul.f32 %v569, %v578
    %v589 = vmul.f32 %v569, %v582
    %v590 = vmul.f32 %v569, %v586
    %592 = vset.pattern.permute.xlu0 0
    %593 = vperm.xlu0 %592, %v37
    %v594 = vpop.permute.xlu0 %593
    %v596 = vadd.f32 %v594, %v587
    %v597 = vadd.f32 %v594, %v588
    %v598 = vadd.f32 %v594, %v589
    %v599 = vadd.f32 %v594, %v590
    %600 = vset.pattern.permute.xlu0 1
    %601 = vperm.xlu0 %600, %v36
    %v602 = vpop.permute.xlu0 %601
    %v604 = vlaneseq
    %v605 = vshrl.u32 %v604, 7
    %v606 = vsub.s32 1, %v605
    %v607 = vrot.slane %v562, %v606
    %v608 = vlaneseq
    %v609 = vshrl.u32 %v608, 7
    %v610 = vsub.s32 1, %v609
    %v611 = vrot.slane %v563, %v610
    %v612 = vlaneseq
    %v613 = vshrl.u32 %v612, 7
    %v614 = vsub.s32 1, %v613
    %v615 = vrot.slane %v564, %v614
    %v616 = vlaneseq
    %v617 = vshrl.u32 %v616, 7
    %v618 = vsub.s32 1, %v617
    %v619 = vrot.slane %v565, %v618
    %v620 = vmul.f32 %v602, %v607
    %v621 = vmul.f32 %v602, %v611
    %v622 = vmul.f32 %v602, %v615
    %v623 = vmul.f32 %v602, %v619
    %v624 = vadd.f32 %v596, %v620
    %v625 = vadd.f32 %v597, %v621
    %v626 = vadd.f32 %v598, %v622
    %v627 = vadd.f32 %v599, %v623
    %628 = vset.pattern.permute.xlu0 2
    %629 = vperm.xlu0 %628, %v36
    %v630 = vpop.permute.xlu0 %629
    %v632 = vlaneseq
    %v633 = vshrl.u32 %v632, 7
    %v634 = vsub.s32 2, %v633
    %v635 = vrot.slane %v562, %v634
    %v636 = vlaneseq
    %v637 = vshrl.u32 %v636, 7
    %v638 = vsub.s32 2, %v637
    %v639 = vrot.slane %v563, %v638
    %v640 = vlaneseq
    %v641 = vshrl.u32 %v640, 7
    %v642 = vsub.s32 2, %v641
    %v643 = vrot.slane %v564, %v642
    %v644 = vlaneseq
    %v645 = vshrl.u32 %v644, 7
    %v646 = vsub.s32 2, %v645
    %v647 = vrot.slane %v565, %v646
    %v648 = vmul.f32 %v630, %v635
    %v649 = vmul.f32 %v630, %v639
    %v650 = vmul.f32 %v630, %v643
    %v651 = vmul.f32 %v630, %v647
    %v652 = vadd.f32 %v624, %v648
    %v653 = vadd.f32 %v625, %v649
    %v654 = vadd.f32 %v626, %v650
    %v655 = vadd.f32 %v627, %v651
    %656 = vset.pattern.permute.xlu0 3
    %657 = vperm.xlu0 %656, %v36
    %v658 = vpop.permute.xlu0 %657
    %v660 = vlaneseq
    %v661 = vshrl.u32 %v660, 7
    %v662 = vsub.s32 3, %v661
    %v663 = vrot.slane %v562, %v662
    %v664 = vlaneseq
    %v665 = vshrl.u32 %v664, 7
    %v666 = vsub.s32 3, %v665
    %v667 = vrot.slane %v563, %v666
    %v668 = vlaneseq
    %v669 = vshrl.u32 %v668, 7
    %v670 = vsub.s32 3, %v669
    %v671 = vrot.slane %v564, %v670
    %v672 = vlaneseq
    %v673 = vshrl.u32 %v672, 7
    %v674 = vsub.s32 3, %v673
    %v675 = vrot.slane %v565, %v674
    %v676 = vmul.f32 %v658, %v663
    %v677 = vmul.f32 %v658, %v667
    %v678 = vmul.f32 %v658, %v671
    %v679 = vmul.f32 %v658, %v675
    %v680 = vadd.f32 %v652, %v676
    %v681 = vadd.f32 %v653, %v677
    %v682 = vadd.f32 %v654, %v678
    %v683 = vadd.f32 %v655, %v679
    %684 = vset.pattern.permute.xlu0 4
    %685 = vperm.xlu0 %684, %v36
    %v686 = vpop.permute.xlu0 %685
    %v688 = vlaneseq
    %v689 = vshrl.u32 %v688, 7
    %v690 = vsub.s32 4, %v689
    %v691 = vrot.slane %v562, %v690
    %v692 = vlaneseq
    %v693 = vshrl.u32 %v692, 7
    %v694 = vsub.s32 4, %v693
    %v695 = vrot.slane %v563, %v694
    %v696 = vlaneseq
    %v697 = vshrl.u32 %v696, 7
    %v698 = vsub.s32 4, %v697
    %v699 = vrot.slane %v564, %v698
    %v700 = vlaneseq
    %v701 = vshrl.u32 %v700, 7
    %v702 = vsub.s32 4, %v701
    %v703 = vrot.slane %v565, %v702
    %v704 = vmul.f32 %v686, %v691
    %v705 = vmul.f32 %v686, %v695
    %v706 = vmul.f32 %v686, %v699
    %v707 = vmul.f32 %v686, %v703
    %v708 = vadd.f32 %v680, %v704
    %v709 = vadd.f32 %v681, %v705
    %v710 = vadd.f32 %v682, %v706
    %v711 = vadd.f32 %v683, %v707
    %712 = vset.pattern.permute.xlu0 5
    %713 = vperm.xlu0 %712, %v36
    %v714 = vpop.permute.xlu0 %713
    %v716 = vlaneseq
    %v717 = vshrl.u32 %v716, 7
    %v718 = vsub.s32 5, %v717
    %v719 = vrot.slane %v562, %v718
    %v720 = vlaneseq
    %v721 = vshrl.u32 %v720, 7
    %v722 = vsub.s32 5, %v721
    %v723 = vrot.slane %v563, %v722
    %v724 = vlaneseq
    %v725 = vshrl.u32 %v724, 7
    %v726 = vsub.s32 5, %v725
    %v727 = vrot.slane %v564, %v726
    %v728 = vlaneseq
    %v729 = vshrl.u32 %v728, 7
    %v730 = vsub.s32 5, %v729
    %v731 = vrot.slane %v565, %v730
    %v732 = vmul.f32 %v714, %v719
    %v733 = vmul.f32 %v714, %v723
    %v734 = vmul.f32 %v714, %v727
    %v735 = vmul.f32 %v714, %v731
    %v736 = vadd.f32 %v708, %v732
    %v737 = vadd.f32 %v709, %v733
    %v738 = vadd.f32 %v710, %v734
    %v739 = vadd.f32 %v711, %v735
    %740 = vset.pattern.permute.xlu0 6
    %741 = vperm.xlu0 %740, %v36
    %v742 = vpop.permute.xlu0 %741
    %v744 = vlaneseq
    %v745 = vshrl.u32 %v744, 7
    %v746 = vsub.s32 6, %v745
    %v747 = vrot.slane %v562, %v746
    %v748 = vlaneseq
    %v749 = vshrl.u32 %v748, 7
    %v750 = vsub.s32 6, %v749
    %v751 = vrot.slane %v563, %v750
    %v752 = vlaneseq
    %v753 = vshrl.u32 %v752, 7
    %v754 = vsub.s32 6, %v753
    %v755 = vrot.slane %v564, %v754
    %v756 = vlaneseq
    %v757 = vshrl.u32 %v756, 7
    %v758 = vsub.s32 6, %v757
    %v759 = vrot.slane %v565, %v758
    %v760 = vmul.f32 %v742, %v747
    %v761 = vmul.f32 %v742, %v751
    %v762 = vmul.f32 %v742, %v755
    %v763 = vmul.f32 %v742, %v759
    %v764 = vadd.f32 %v736, %v760
    %v765 = vadd.f32 %v737, %v761
    %v766 = vadd.f32 %v738, %v762
    %v767 = vadd.f32 %v739, %v763
    %768 = vset.pattern.permute.xlu0 7
    %769 = vperm.xlu0 %768, %v36
    %v770 = vpop.permute.xlu0 %769
    %v772 = vlaneseq
    %v773 = vshrl.u32 %v772, 7
    %v774 = vsub.s32 7, %v773
    %v775 = vrot.slane %v562, %v774
    %v776 = vlaneseq
    %v777 = vshrl.u32 %v776, 7
    %v778 = vsub.s32 7, %v777
    %v779 = vrot.slane %v563, %v778
    %v780 = vlaneseq
    %v781 = vshrl.u32 %v780, 7
    %v782 = vsub.s32 7, %v781
    %v783 = vrot.slane %v564, %v782
    %v784 = vlaneseq
    %v785 = vshrl.u32 %v784, 7
    %v786 = vsub.s32 7, %v785
    %v787 = vrot.slane %v565, %v786
    %v788 = vmul.f32 %v770, %v775
    %v789 = vmul.f32 %v770, %v779
    %v790 = vmul.f32 %v770, %v783
    %v791 = vmul.f32 %v770, %v787
    %v792 = vadd.f32 %v764, %v788
    %v793 = vadd.f32 %v765, %v789
    %v794 = vadd.f32 %v766, %v790
    %v795 = vadd.f32 %v767, %v791
    %v796 = vcombine.high %v30, %v30
    %v797 = vcombine.high %v31, %v31
    %v800 = vadd.f32 %v792, %v30
    %v801 = vadd.f32 %v793, %v796
    %v802 = vadd.f32 %v794, %v31
    %v803 = vadd.f32 %v795, %v797
    %v808 = vcombine.low %v800, %v801
    %v809 = vcombine.low %v802, %v803
    %812 = vst [vmem:[#allocation2] sm:$0xff] %v808
    %813 = vst [vmem:[#allocation2 + $0x8] sm:$0xff] %v809
    // Predicated region
    $region34: #{tpu_custom_call.1} parent=1 // pred_check
      _
    $region35: #{tpu_custom_call.1} parent=1 // pred_check_branch
      %815 = sbr.rel (0) target = $region37
    $region36: #{tpu_custom_call.1} parent=1 // pred_region
      %s817 = ssub.s32 256, 256
      %818 = vsyncadd [#allocation3], %s817
      %s819 = sshll.u32 [#allocation2], 4
      %s820 = int_to_ptr.vmem [resolvable:$true] %s819
      %825 = dma.vmem_to_hbm [thread:$0]  %s820, 256, %s8, [#allocation3], 128, 128, 8
    $region37: #{tpu_custom_call.1} parent=1 // pred_fallthru
      _
    // Predicated region
    $region38: #{tpu_custom_call.1} parent=1 // pred_check
      _
    $region39: #{tpu_custom_call.1} parent=1 // pred_check_branch
      %827 = sbr.rel (0) target = $region41
    $region40: #{tpu_custom_call.1} parent=1 // pred_region
      %828 = dma.done [#allocation3], 256
    $region41: #{tpu_custom_call.1} parent=1 // pred_fallthru
      _
    %829 = vsyncpa [#allocation3], 1

</llo_original>
